<compile_context>
chip_gen: v7x
topology: tpu7x:2x2x1
jax: 0.10.0
libtpu: 0.0.40
codegen_flags: <defaults>
</compile_context>

<pallas_src>
import functools

import numpy as np
import jax
import jax.numpy as jnp
from jax.experimental import pallas as pl
from jax.experimental.pallas import tpu as pltpu


# ---------------------------------------------------------------------------
# Kernel
# ---------------------------------------------------------------------------
def _fused_textcnn_kernel(x_ref, w_ref, mask_ref, p_ref, wfc_ref, o_ref):
    """conv(one packed matmul over rolled copies) + ReLU + masked matmul-pool + FC.

    x_ref:    (bB*S, H)        batch-flattened input slab (f32 or bf16)
    w_ref:    (max_fs*H, GF)   packed conv weights, K laid out as [shift i, dim h]
    mask_ref: (bB*S, GF)       1.0 where time step t is valid for that column's
                               filter size, else 0.0 (also kills wrap rows)
    p_ref:    (bB, bB*S)       block-diagonal pooling matrix (1s over each
                               batch row's S time positions)
    wfc_ref:  (GF, L_pad)      FC weight^T with 1/T folded in, padded to 128 lanes
    o_ref:    (bB, L_pad)      lane-dense logits slab
    """
    rows, H = x_ref.shape
    max_fs = w_ref.shape[0] // H

    # Upcast once right after the (possibly bf16) DMA; all compute stays f32.
    x = x_ref[...].astype(jnp.float32)

    # Conv LHS: lane-concat of `max_fs` sublane-rolled copies -> ONE matmul with
    # K = max_fs*H.  roll(x, rows - i) puts x[(r + i) mod rows] at row r; the
    # wrapped rows only reach time positions the mask (or zero weight rows for
    # shifts >= fs of that group) zeroes out.
    shifted = [x]
    for i in range(1, max_fs):                       # static, tiny unroll
        shifted.append(pltpu.roll(x, rows - i, axis=0))
    lhs = shifted[0] if max_fs == 1 else jnp.concatenate(shifted, axis=-1)

    conv = jnp.dot(lhs, w_ref[...], preferred_element_type=jnp.float32)
    act = jnp.maximum(conv, 0.0) * mask_ref[...]     # middle ReLU + validity mask

    # AvgPool as one MXU matmul (1/T folded into wfc; the 2nd ReLU is a no-op
    # on a mean of ReLU outputs).
    pooled = jnp.dot(p_ref[...], act, preferred_element_type=jnp.float32)

    # Dropout = identity at inference.  Final FC (no bias), lane-dense store.
    o_ref[...] = jnp.dot(pooled, wfc_ref[...], preferred_element_type=jnp.float32)


# ---------------------------------------------------------------------------
# Tiling / VMEM helpers
# ---------------------------------------------------------------------------
def _pick_batch_block(B, requested):
    """Default ~128 batch rows per grid step: keeps the pooling matmul at or
    below the conv matmul cost, amortizes the ~0.35us/step overhead, and for
    B > 128 guarantees >= 2 'parallel' steps (both v7x TensorCores)."""
    bb = min(128 if requested is None else int(requested), B)
    bb = max(bb, 1)
    if bb >= B:
        return B                      # single step: block == full array dims
    return max(8, (bb // 8) * 8)      # multi-step: sublane-aligned block height


def _vmem_limit_bytes(bb, S, H, GF, max_fs, L_pad, x_itemsize):
    """Rough per-step VMEM budget (double-buffered I/O + f32 temporaries)."""
    lane = lambda n: -(-n // 128) * 128
    sub = lambda n: -(-n // 8) * 8
    rows = bb * S
    x_tile = rows * lane(H) * x_itemsize
    out_tile = sub(bb) * L_pad * 4
    fixed = (sub(max_fs * H) * lane(GF) + rows * lane(GF)
             + sub(bb) * lane(rows) + sub(GF) * L_pad) * 4
    # f32 temporaries: upcast x, rolled copies, concat LHS, conv, masked act.
    tmp = ((max_fs + 1) * rows * lane(H) * 4
           + rows * lane(max_fs * H) * 4
           + 2 * rows * lane(GF) * 4)
    est = 2 * (x_tile + out_tile) + 2 * fixed + tmp
    # Headroom, floored at the 32 MiB scoped default, capped under v7x's 64 MiB.
    return int(min(max(est + (8 << 20), 32 << 20), 48 << 20))


# ---------------------------------------------------------------------------
# Wrapper
# ---------------------------------------------------------------------------
@functools.partial(jax.jit,
                   static_argnames=("filters", "batch_block", "use_bf16"))
def ann_textcnn_forward(x, conv_weights, fc_weight, filters,
                        batch_block=None, use_bf16=False):
    """Forward pass matching ANN_TextCNN.forward (inference mode).

    x:            (B, S, H)
    conv_weights: tuple of (F, 1, fs, H) arrays, one per filter size
    fc_weight:    (L, len(filters)*F)   (PyTorch (out, in) layout)
    """
    x = x.astype(jnp.float32)
    B, S, H = x.shape
    F = conv_weights[0].shape[0]
    GF = len(filters) * F
    L = fc_weight.shape[0]
    L_pad = pl.cdiv(L, 128) * 128
    max_fs = max(filters)

    # ---- batch tiling (pad B to a multiple of the block; zero rows give zero
    # logits that are sliced off afterwards) --------------------------------
    bb = _pick_batch_block(B, batch_block)
    B_pad = pl.cdiv(B, bb) * bb
    if B_pad != B:
        x = jnp.pad(x, ((0, B_pad - B), (0, 0), (0, 0)))
    grid = (B_pad // bb,)
    rows = bb * S

    # ---- packed conv weight: (max_fs*H, GF); zero rows for shifts >= fs ----
    cols = []
    for fs, w in zip(filters, conv_weights):
        wg = w.reshape(F, fs, H).astype(jnp.float32)
        wg = jnp.pad(wg, ((0, 0), (0, max_fs - fs), (0, 0)))
        cols.append(wg.reshape(F, max_fs * H).T)                  # (max_fs*H, F)
    w_packed = jnp.concatenate(cols, axis=1)                      # (max_fs*H, GF)

    # ---- static per-tile validity mask + block-diagonal pooling matrix -----
    base = np.zeros((S, GF), np.float32)
    for g, fs in enumerate(filters):
        base[: S - fs + 1, g * F:(g + 1) * F] = 1.0
    mask = jnp.asarray(np.tile(base, (bb, 1)))                    # (rows, GF)
    pool = jnp.asarray(np.kron(np.eye(bb, dtype=np.float32),
                               np.ones((1, S), np.float32)))      # (bb, rows)

    # ---- FC weight^T with AvgPool's 1/T folded in; lane-dense (128 cols) ---
    inv_t = np.concatenate([np.full((F,), 1.0 / (S - fs + 1), np.float32)
                            for fs in filters])
    wfc = fc_weight.astype(jnp.float32).T * jnp.asarray(inv_t)[:, None]
    wfc = jnp.pad(wfc, ((0, 0), (0, L_pad - L)))                  # (GF, L_pad)

    # ---- x: no seq padding; only a free contiguous reshape -----------------
    if use_bf16:
        x = x.astype(jnp.bfloat16)    # halves x DMA bytes; kernel upcasts to f32
    x_flat = x.reshape(B_pad * S, H)

    flops = (2 * B_pad * S * (max_fs * H) * GF
             + 2 * B_pad * S * bb * GF
             + 2 * B_pad * GF * L_pad)
    bytes_accessed = (x_flat.size * x_flat.dtype.itemsize
                      + (max_fs * H * GF + rows * GF + bb * rows + GF * L_pad) * 4
                      + B_pad * L_pad * 4)

    out = pl.pallas_call(
        _fused_textcnn_kernel,
        out_shape=jax.ShapeDtypeStruct((B_pad, L_pad), jnp.float32),
        grid_spec=pl.GridSpec(
            grid=grid,
            in_specs=[
                pl.BlockSpec((rows, H), lambda i: (i, 0)),
                pl.BlockSpec((max_fs * H, GF), lambda i: (0, 0)),
                pl.BlockSpec((rows, GF), lambda i: (0, 0)),
                pl.BlockSpec((bb, rows), lambda i: (0, 0)),
                pl.BlockSpec((GF, L_pad), lambda i: (0, 0)),
            ],
            out_specs=pl.BlockSpec((bb, L_pad), lambda i: (i, 0)),
        ),
        compiler_params=pltpu.CompilerParams(
            dimension_semantics=("parallel",),
            vmem_limit_bytes=_vmem_limit_bytes(
                bb, S, H, GF, max_fs, L_pad, 2 if use_bf16 else 4)),
        cost_estimate=pl.CostEstimate(flops=flops, transcendentals=0,
                                      bytes_accessed=bytes_accessed),
    )(x_flat, w_packed, mask, pool, wfc)

    return out[:B, :L]


# ---------------------------------------------------------------------------
# Pure-JAX reference (built straight from the unpacked weights) for checking.
# ---------------------------------------------------------------------------
def reference_forward(x, conv_weights, fc_weight, filters):
    x = x.astype(jnp.float32)
    B, S, H = x.shape
    pooled = []
    for fs, w in zip(filters, conv_weights):
        F = w.shape[0]
        T = S - fs + 1
        cols = jnp.stack([x[:, t:t + fs, :] for t in range(T)], axis=1)
        cols = cols.reshape(B, T, fs * H)
        conv = jnp.einsum("btk,fk->btf", cols,
                          w.reshape(F, fs * H).astype(jnp.float32),
                          precision=jax.lax.Precision.HIGHEST)
        conv = jnp.maximum(conv, 0.0)
        pooled.append(jnp.maximum(jnp.mean(conv, axis=1), 0.0))
    flat = jnp.concatenate(pooled, axis=1)
    return jnp.dot(flat, fc_weight.T.astype(jnp.float32),
                   precision=jax.lax.Precision.HIGHEST)


# ---------------------------------------------------------------------------
# Main
# ---------------------------------------------------------------------------
if __name__ == "__main__":
    batch = 2
    sentence_length = 16
    hidden_dim = 32
    filters = (2, 3, 4)
    filter_num = 8
    label_num = 4

    key = jax.random.PRNGKey(0)
    k_x, k_fc, *k_convs = jax.random.split(key, 2 + len(filters))

    x = jax.random.normal(k_x, (batch, sentence_length, hidden_dim),
                          dtype=jnp.float32)
    conv_weights = tuple(
        0.1 * jax.random.normal(k, (filter_num, 1, fs, hidden_dim),
                                dtype=jnp.float32)
        for k, fs in zip(k_convs, filters)
    )
    fc_weight = 0.1 * jax.random.normal(
        k_fc, (label_num, len(filters) * filter_num), dtype=jnp.float32)

    ref = reference_forward(x, conv_weights, fc_weight, filters)

    # f32 path (strict check).
    out = ann_textcnn_forward(x, conv_weights, fc_weight, filters,
                              use_bf16=False)
    out = jax.block_until_ready(out)
    assert out.shape == (batch, label_num)
    assert out.dtype == jnp.float32
    np.testing.assert_allclose(np.asarray(out), np.asarray(ref),
                               rtol=2e-3, atol=2e-3)

    # bf16 x-streaming path (halved input DMA, f32 compute) -> looser check.
    out_bf16 = jax.block_until_ready(
        ann_textcnn_forward(x, conv_weights, fc_weight, filters,
                            use_bf16=True))
    np.testing.assert_allclose(np.asarray(out_bf16), np.asarray(ref),
                               rtol=5e-2, atol=5e-2)

    # Multi-step grid path (batch zero-padding + >=2 'parallel' steps).
    B2 = 20
    x2 = jax.random.normal(jax.random.PRNGKey(1),
                           (B2, sentence_length, hidden_dim), dtype=jnp.float32)
    out2 = jax.block_until_ready(
        ann_textcnn_forward(x2, conv_weights, fc_weight, filters,
                            batch_block=8, use_bf16=False))
    ref2 = reference_forward(x2, conv_weights, fc_weight, filters)
    assert out2.shape == (B2, label_num)
    np.testing.assert_allclose(np.asarray(out2), np.asarray(ref2),
                               rtol=2e-3, atol=2e-3)

    print("KERNEL_OK")
</pallas_src>

<mosaic_0001>
module attributes {stable_mosaic.version = 11 : i64} {
  func.func @_fused_textcnn_kernel(%arg0: i32, %arg1: memref<32x32xf32, #tpu.memory_space<vmem>>, %arg2: memref<128x24xf32, #tpu.memory_space<vmem>>, %arg3: memref<32x24xf32, #tpu.memory_space<vmem>>, %arg4: memref<2x32xf32, #tpu.memory_space<vmem>>, %arg5: memref<24x128xf32, #tpu.memory_space<vmem>>, %arg6: memref<2x128xf32, #tpu.memory_space<vmem>>) attributes {dimension_semantics = [#tpu.dimension_semantics<parallel>], iteration_bounds = array<i64: 1>, scalar_prefetch = 0 : i64, scratch_operands = 0 : i64, tpu.core_type = #tpu.core_type<tc>, window_params = [{transform_indices = @transform_0, window_bounds = array<i64: 32, 32>}, {pipeline_mode = #tpu.pipeline_mode<synchronous>, transform_indices = @transform_1, window_bounds = array<i64: 128, 24>}, {pipeline_mode = #tpu.pipeline_mode<synchronous>, transform_indices = @transform_2, window_bounds = array<i64: 32, 24>}, {pipeline_mode = #tpu.pipeline_mode<synchronous>, transform_indices = @transform_3, window_bounds = array<i64: 2, 32>}, {pipeline_mode = #tpu.pipeline_mode<synchronous>, transform_indices = @transform_4, window_bounds = array<i64: 24, 128>}, {transform_indices = @transform_5, window_bounds = array<i64: 2, 128>}]} {
    %c0 = arith.constant 0 : index
    %c0_0 = arith.constant 0 : index
    %0 = vector.load %arg1[%c0, %c0_0] : memref<32x32xf32, #tpu.memory_space<vmem>>, vector<32x32xf32>
    %c31_i32 = arith.constant 31 : i32
    %1 = tpu.dynamic_rotate %0 by %c31_i32 dim 0 : vector<32x32xf32>, i32 -> vector<32x32xf32>
    %c30_i32 = arith.constant 30 : i32
    %2 = tpu.dynamic_rotate %0 by %c30_i32 dim 0 : vector<32x32xf32>, i32 -> vector<32x32xf32>
    %c29_i32 = arith.constant 29 : i32
    %3 = tpu.dynamic_rotate %0 by %c29_i32 dim 0 : vector<32x32xf32>, i32 -> vector<32x32xf32>
    %4 = tpu.concatenate %0, %1, %2, %3 in 1 : vector<32x32xf32>, vector<32x32xf32>, vector<32x32xf32>, vector<32x32xf32> -> vector<32x128xf32>
    %c0_1 = arith.constant 0 : index
    %c0_2 = arith.constant 0 : index
    %5 = vector.load %arg2[%c0_1, %c0_2] : memref<128x24xf32, #tpu.memory_space<vmem>>, vector<128x24xf32>
    %cst = arith.constant dense<0.000000e+00> : vector<32x24xf32>
    %6 = tpu.matmul %4, %5, %cst {dimension_numbers = #tpu.dot_dimension_numbers<[1], [0], [0], [1], [0, 0, 1, 1], [], []>} : vector<32x128xf32>, vector<128x24xf32>, vector<32x24xf32> -> vector<32x24xf32>
    %cst_3 = arith.constant 0.000000e+00 : f32
    %7 = vector.broadcast %cst_3 : f32 to vector<32x24xf32>
    %8 = arith.maximumf %6, %7 : vector<32x24xf32>
    %c0_4 = arith.constant 0 : index
    %c0_5 = arith.constant 0 : index
    %9 = vector.load %arg3[%c0_4, %c0_5] : memref<32x24xf32, #tpu.memory_space<vmem>>, vector<32x24xf32>
    %10 = arith.mulf %8, %9 : vector<32x24xf32>
    %c0_6 = arith.constant 0 : index
    %c0_7 = arith.constant 0 : index
    %11 = vector.load %arg4[%c0_6, %c0_7] : memref<2x32xf32, #tpu.memory_space<vmem>>, vector<2x32xf32>
    %cst_8 = arith.constant dense<0.000000e+00> : vector<2x24xf32>
    %12 = tpu.matmul %11, %10, %cst_8 {dimension_numbers = #tpu.dot_dimension_numbers<[1], [0], [0], [1], [0, 0, 1, 1], [], []>} : vector<2x32xf32>, vector<32x24xf32>, vector<2x24xf32> -> vector<2x24xf32>
    %c0_9 = arith.constant 0 : index
    %c0_10 = arith.constant 0 : index
    %13 = vector.load %arg5[%c0_9, %c0_10] : memref<24x128xf32, #tpu.memory_space<vmem>>, vector<24x128xf32>
    %cst_11 = arith.constant dense<0.000000e+00> : vector<2x128xf32>
    %14 = tpu.matmul %12, %13, %cst_11 {dimension_numbers = #tpu.dot_dimension_numbers<[1], [0], [0], [1], [0, 0, 1, 1], [], []>} : vector<2x24xf32>, vector<24x128xf32>, vector<2x128xf32> -> vector<2x128xf32>
    %c0_12 = arith.constant 0 : index
    %c0_13 = arith.constant 0 : index
    %15 = vector.load %arg6[%c0_12, %c0_13] : memref<2x128xf32, #tpu.memory_space<vmem>>, vector<2x128xf32>
    tpu.vector_store %arg6[%c0_12, %c0_13], %14 {strides = array<i32>} : memref<2x128xf32, #tpu.memory_space<vmem>>, vector<2x128xf32>,
    return
  }
  func.func @transform_0(%arg0: i32) -> (i32, i32) {
    %c0_i32 = arith.constant 0 : i32
    %c0_i32_0 = arith.constant 0 : i32
    return %arg0, %c0_i32 : i32, i32
  }
  func.func @transform_1(%arg0: i32) -> (i32, i32) {
    %c0_i32 = arith.constant 0 : i32
    %c0_i32_0 = arith.constant 0 : i32
    %c0_i32_1 = arith.constant 0 : i32
    return %c0_i32, %c0_i32_0 : i32, i32
  }
  func.func @transform_2(%arg0: i32) -> (i32, i32) {
    %c0_i32 = arith.constant 0 : i32
    %c0_i32_0 = arith.constant 0 : i32
    %c0_i32_1 = arith.constant 0 : i32
    return %c0_i32, %c0_i32_0 : i32, i32
  }
  func.func @transform_3(%arg0: i32) -> (i32, i32) {
    %c0_i32 = arith.constant 0 : i32
    %c0_i32_0 = arith.constant 0 : i32
    %c0_i32_1 = arith.constant 0 : i32
    return %c0_i32, %c0_i32_0 : i32, i32
  }
  func.func @transform_4(%arg0: i32) -> (i32, i32) {
    %c0_i32 = arith.constant 0 : i32
    %c0_i32_0 = arith.constant 0 : i32
    %c0_i32_1 = arith.constant 0 : i32
    return %c0_i32, %c0_i32_0 : i32, i32
  }
  func.func @transform_5(%arg0: i32) -> (i32, i32) {
    %c0_i32 = arith.constant 0 : i32
    %c0_i32_0 = arith.constant 0 : i32
    return %arg0, %c0_i32 : i32, i32
  }
}

</mosaic_0001>

<llo_original>
// kernel: ann_textcnn_forward.1
$region0: #{ann_textcnn_forward.1}
  #allocation0 [shape = 'u32[]', space=smem, size = 0x4, offset = 0x4, fixed_abs, tag = 'smem constant byte address 0x4 - core index']
  #allocation1 [shape = 'u32[144,128]{1,0:T(1,128)}', space=vmem, size = 0x12000, scoped, tag = 'internal scratch']
  %s0 = inlined_call_operand.vmem [shape: f32[32,32], index: 0, kind: input, shape index: {}]
  %s1 = inlined_call_operand.vmem [shape: f32[128,24], index: 1, kind: input, shape index: {}]
  %s2 = inlined_call_operand.vmem [shape: f32[32,24], index: 2, kind: input, shape index: {}]
  %s3 = inlined_call_operand.vmem [shape: f32[2,32], index: 3, kind: input, shape index: {}]
  %s4 = inlined_call_operand.vmem [shape: f32[24,128], index: 4, kind: input, shape index: {}]
  %s5 = inlined_call_operand.hbm [shape: f32[2,128], index: 5, kind: output, shape index: {}]
  %s6 = sld [smem:[#allocation0]]
  $region30: #{ann_textcnn_forward.1} parent=0
    _
  %s8 = ssub.s32 1, %s6
  %s9 = scalar_select 0, %s8, %s6
  $region1: #{ann_textcnn_forward.1} parent=0
    #allocation2 [shape = 'u8[1024]{0}', space=vmem, size = 0x400, scoped, tag = 'output window, operand 0, single buffered']
    #allocation3 [shape = 's32[1]{0}', space=sflag, size = 0x4, scoped, tag = 'scoped memory for ann_textcnn_forward.1']
    %10 = vsyncpa [#allocation3], 0
    // Predicated region
    $region2: #{ann_textcnn_forward.1} parent=1 // pred_check
      _
    $region3: #{ann_textcnn_forward.1} parent=1 // pred_check_branch
      %12 = sbr.rel (0) target = $region5
    $region4: #{ann_textcnn_forward.1} parent=1 // pred_region
      _
    $region5: #{ann_textcnn_forward.1} parent=1 // pred_fallthru
      _
    // Predicated region
    $region6: #{ann_textcnn_forward.1} parent=1 // pred_check
      _
    $region7: #{ann_textcnn_forward.1} parent=1 // pred_check_branch
      %14 = sbr.rel (0) target = $region9
    $region8: #{ann_textcnn_forward.1} parent=1 // pred_region
      _
    $region9: #{ann_textcnn_forward.1} parent=1 // pred_fallthru
      _
    // Predicated region
    $region10: #{ann_textcnn_forward.1} parent=1 // pred_check
      _
    $region11: #{ann_textcnn_forward.1} parent=1 // pred_check_branch
      %16 = sbr.rel (0) target = $region13
    $region12: #{ann_textcnn_forward.1} parent=1 // pred_region
      _
    $region13: #{ann_textcnn_forward.1} parent=1 // pred_fallthru
      _
    // Predicated region
    $region14: #{ann_textcnn_forward.1} parent=1 // pred_check
      _
    $region15: #{ann_textcnn_forward.1} parent=1 // pred_check_branch
      %18 = sbr.rel (0) target = $region17
    $region16: #{ann_textcnn_forward.1} parent=1 // pred_region
      _
    $region17: #{ann_textcnn_forward.1} parent=1 // pred_fallthru
      _
    // Predicated region
    $region18: #{ann_textcnn_forward.1} parent=1 // pred_check
      _
    $region19: #{ann_textcnn_forward.1} parent=1 // pred_check_branch
      %20 = sbr.rel (0) target = $region21
    $region20: #{ann_textcnn_forward.1} parent=1 // pred_region
      _
    $region21: #{ann_textcnn_forward.1} parent=1 // pred_fallthru
      _
    %v21 = vld [vmem:[%s0] sm:$0xff]
    %v22 = vld [vmem:[%s0 + $0x8] sm:$0xff]
    %v23 = vld [vmem:[%s0 + $0x10] sm:$0xff]
    %v24 = vld [vmem:[%s0 + $0x18] sm:$0xff]
    %v25 = vrot.slane %v21, 1
    %v26 = vrot.slane %v22, 1
    %v27 = vrot.slane %v23, 1
    %v28 = vrot.slane %v24, 1
    %v29 = vlaneseq
    %v30 = vshrl.u32 %v29, 7
    %vm31 = vcmp.lt.s32.totalorder %v30, 7
    %v32 = vsel %vm31, %v27, %v28
    %v33 = vsel %vm31, %v26, %v27
    %v34 = vsel %vm31, %v25, %v26
    %v35 = vsel %vm31, %v28, %v25
    %v36 = vrot.slane %v21, 2
    %v37 = vrot.slane %v22, 2
    %v38 = vrot.slane %v23, 2
    %v39 = vrot.slane %v24, 2
    %vm40 = vcmp.lt.s32.totalorder %v30, 6
    %v41 = vsel %vm40, %v38, %v39
    %v42 = vsel %vm40, %v37, %v38
    %v43 = vsel %vm40, %v36, %v37
    %v44 = vsel %vm40, %v39, %v36
    %v45 = vrot.slane %v21, 3
    %v46 = vrot.slane %v22, 3
    %v47 = vrot.slane %v23, 3
    %v48 = vrot.slane %v24, 3
    %vm49 = vcmp.lt.s32.totalorder %v30, 5
    %v50 = vsel %vm49, %v47, %v48
    %v51 = vsel %vm49, %v46, %v47
    %v52 = vsel %vm49, %v45, %v46
    %v53 = vsel %vm49, %v48, %v45
    %58 = vrot.lane.b32.xlu0 %v34, 32
    %v59 = vpop.permute.xlu0 %58
    %60 = vrot.lane.b32.xlu0 %v33, 32
    %v61 = vpop.permute.xlu0 %60
    %62 = vrot.lane.b32.xlu0 %v32, 32
    %v63 = vpop.permute.xlu0 %62
    %64 = vrot.lane.b32.xlu0 %v35, 32
    %v65 = vpop.permute.xlu0 %64
    %74 = vrot.lane.b32.xlu0 %v43, 64
    %v75 = vpop.permute.xlu0 %74
    %76 = vrot.lane.b32.xlu0 %v42, 64
    %v77 = vpop.permute.xlu0 %76
    %78 = vrot.lane.b32.xlu0 %v41, 64
    %v79 = vpop.permute.xlu0 %78
    %80 = vrot.lane.b32.xlu0 %v44, 64
    %v81 = vpop.permute.xlu0 %80
    %90 = vrot.lane.b32.xlu0 %v52, 96
    %v91 = vpop.permute.xlu0 %90
    %92 = vrot.lane.b32.xlu0 %v51, 96
    %v93 = vpop.permute.xlu0 %92
    %94 = vrot.lane.b32.xlu0 %v50, 96
    %v95 = vpop.permute.xlu0 %94
    %96 = vrot.lane.b32.xlu0 %v53, 96
    %v97 = vpop.permute.xlu0 %96
    %vm102 = vcmask 261120
    %v103 = vsel %vm102, %v21, %v59
    %v104 = vsel %vm102, %v22, %v61
    %v105 = vsel %vm102, %v23, %v63
    %v106 = vsel %vm102, %v24, %v65
    %vm107 = vcmask 523264
    %v108 = vsel %vm107, %v103, %v75
    %v109 = vsel %vm107, %v104, %v77
    %v110 = vsel %vm107, %v105, %v79
    %v111 = vsel %vm107, %v106, %v81
    %vm112 = vcmask 785408
    %v113 = vsel %vm112, %v108, %v91
    %v114 = vsel %vm112, %v109, %v93
    %v115 = vsel %vm112, %v110, %v95
    %v116 = vsel %vm112, %v111, %v97
    %v117 = vld [vmem:[%s1] sm:$0xff]
    %v118 = vld [vmem:[%s1 + $0x8] sm:$0xff]
    %v119 = vld [vmem:[%s1 + $0x10] sm:$0xff]
    %v120 = vld [vmem:[%s1 + $0x18] sm:$0xff]
    %v121 = vld [vmem:[%s1 + $0x20] sm:$0xff]
    %v122 = vld [vmem:[%s1 + $0x28] sm:$0xff]
    %v123 = vld [vmem:[%s1 + $0x30] sm:$0xff]
    %v124 = vld [vmem:[%s1 + $0x38] sm:$0xff]
    %v125 = vld [vmem:[%s1 + $0x40] sm:$0xff]
    %v126 = vld [vmem:[%s1 + $0x48] sm:$0xff]
    %v127 = vld [vmem:[%s1 + $0x50] sm:$0xff]
    %v128 = vld [vmem:[%s1 + $0x58] sm:$0xff]
    %v129 = vld [vmem:[%s1 + $0x60] sm:$0xff]
    %v130 = vld [vmem:[%s1 + $0x68] sm:$0xff]
    %v131 = vld [vmem:[%s1 + $0x70] sm:$0xff]
    %v132 = vld [vmem:[%s1 + $0x78] sm:$0xff]
    %133 = vmatprep.subr.mxu0 0.0
    %134 = vmatpush1.msra.mxu0 %v117
    %135 = vmatprep.subr.mxu0 0.0
    %136 = vmatpush1.msra.mxu0 %v118
    %137 = vmatprep.subr.mxu0 0.0
    %138 = vmatpush1.msra.mxu0 %v119
    %139 = vmatprep.subr.mxu0 0.0
    %140 = vmatpush1.msra.mxu0 %v120
    %141 = vmatprep.subr.mxu0 0.0
    %142 = vmatpush1.msra.mxu0 %v121
    %143 = vmatprep.subr.mxu0 0.0
    %144 = vmatpush1.msra.mxu0 %v122
    %145 = vmatprep.subr.mxu0 0.0
    %146 = vmatpush1.msra.mxu0 %v123
    %147 = vmatprep.subr.mxu0 0.0
    %148 = vmatpush1.msra.mxu0 %v124
    %149 = vmatprep.subr.mxu0 0.0
    %150 = vmatpush1.msra.mxu0 %v125
    %151 = vmatprep.subr.mxu0 0.0
    %152 = vmatpush1.msra.mxu0 %v126
    %153 = vmatprep.subr.mxu0 0.0
    %154 = vmatpush1.msra.mxu0 %v127
    %155 = vmatprep.subr.mxu0 0.0
    %156 = vmatpush1.msra.mxu0 %v128
    %157 = vmatprep.subr.mxu0 0.0
    %158 = vmatpush1.msra.mxu0 %v129
    %159 = vmatprep.subr.mxu0 0.0
    %160 = vmatpush1.msra.mxu0 %v130
    %161 = vmatprep.subr.mxu0 0.0
    %162 = vmatpush1.msra.mxu0 %v131
    %163 = vmatprep.subr.mxu0 0.0
    %164 = vmatpush1.msra.mxu0 %v132
    %165 = vmatprep.subr.mxu0 0.0
    %166 = vmatpush1.msra.mxu0 0.0
    %167 = vmatprep.subr.mxu0 0.0
    %168 = vmatpush1.msra.mxu0 0.0
    %169 = vmatprep.subr.mxu0 0.0
    %170 = vmatpush1.msra.mxu0 0.0
    %171 = vmatprep.subr.mxu0 0.0
    %172 = vmatpush1.msra.mxu0 0.0
    %173 = vmatprep.subr.mxu0 0.0
    %174 = vmatpush1.msra.mxu0 0.0
    %175 = vmatprep.subr.mxu0 0.0
    %176 = vmatpush1.msra.mxu0 0.0
    %177 = vmatprep.subr.mxu0 0.0
    %178 = vmatpush1.msra.mxu0 0.0
    %179 = vmatprep.subr.mxu0 0.0
    %180 = vmatpush1.msra.mxu0 0.0
    %181 = vmatprep.subr.mxu0 0.0
    %182 = vmatpush1.msra.mxu0 0.0
    %183 = vmatprep.subr.mxu0 0.0
    %184 = vmatpush1.msra.mxu0 0.0
    %185 = vmatprep.subr.mxu0 0.0
    %186 = vmatpush1.msra.mxu0 0.0
    %187 = vmatprep.subr.mxu0 0.0
    %188 = vmatpush1.msra.mxu0 0.0
    %189 = vmatprep.subr.mxu0 0.0
    %190 = vmatpush1.msra.mxu0 0.0
    %191 = vmatprep.subr.mxu0 0.0
    %192 = vmatpush1.msra.mxu0 0.0
    %193 = vmatprep.subr.mxu0 0.0
    %194 = vmatpush1.msra.mxu0 0.0
    %195 = vmatprep.subr.mxu0 0.0
    %196 = vmatpush1.msra.mxu0 0.0
    %197 = vmatprep.mubr.f32.mxu0 0.0
    %198 = vmatmul.mubr.f32.gmra.mrb[0].mxu0 %v113
    %v199 = vpop.f32.mrb[0].mxu0
    %v200 = vadd.f32 0.0, %v199
    %v201 = vpop.f32.mrb[0].mxu0
    %202 = vmatprep.mubr.f32.mxu0 0.0
    %203 = vmatmul.mubr.f32.gmra.mrb[0].mxu0 %v114
    %v204 = vpop.f32.mrb[0].mxu0
    %v205 = vadd.f32 0.0, %v204
    %v206 = vpop.f32.mrb[0].mxu0
    %207 = vmatprep.mubr.f32.mxu0 0.0
    %208 = vmatmul.mubr.f32.gmra.mrb[0].mxu0 %v115
    %v209 = vpop.f32.mrb[0].mxu0
    %v210 = vadd.f32 0.0, %v209
    %v211 = vpop.f32.mrb[0].mxu0
    %212 = vmatprep.mubr.f32.mxu0 0.0
    %213 = vmatmul.mubr.f32.gmra.mrb[0].mxu0 %v116
    %v214 = vpop.f32.mrb[0].mxu0
    %v215 = vadd.f32 0.0, %v214
    %v216 = vpop.f32.mrb[0].mxu0
    %217 = vdwg.mxu0
    %v218 = vmax.f32 %v200, 0.0
    %v219 = vmax.f32 %v205, 0.0
    %v220 = vmax.f32 %v210, 0.0
    %v221 = vmax.f32 %v215, 0.0
    %v222 = vld [vmem:[%s2] sm:$0xff]
    %v223 = vld [vmem:[%s2 + $0x8] sm:$0xff]
    %v224 = vld [vmem:[%s2 + $0x10] sm:$0xff]
    %v225 = vld [vmem:[%s2 + $0x18] sm:$0xff]
    %v226 = vmul.f32 %v218, %v222
    %v227 = vmul.f32 %v219, %v223
    %v228 = vmul.f32 %v220, %v224
    %v229 = vmul.f32 %v221, %v225
    %v230 = vld [vmem:[%s3] sm:$0x3]
    %v232 = vsel %vm102, %v230, 0
    %234 = vmatprep.subr.mxu0 0.0
    %235 = vmatpush1.msra.mxu0 %v226
    %236 = vmatprep.subr.mxu0 0.0
    %237 = vmatpush1.msra.mxu0 %v227
    %238 = vmatprep.subr.mxu0 0.0
    %239 = vmatpush1.msra.mxu0 %v228
    %240 = vmatprep.subr.mxu0 0.0
    %241 = vmatpush1.msra.mxu0 %v229
    %242 = vmatprep.subr.mxu0 0.0
    %243 = vmatpush1.msra.mxu0 0.0
    %244 = vmatprep.subr.mxu0 0.0
    %245 = vmatpush1.msra.mxu0 0.0
    %246 = vmatprep.subr.mxu0 0.0
    %247 = vmatpush1.msra.mxu0 0.0
    %248 = vmatprep.subr.mxu0 0.0
    %249 = vmatpush1.msra.mxu0 0.0
    %250 = vmatprep.subr.mxu0 0.0
    %251 = vmatpush1.msra.mxu0 0.0
    %252 = vmatprep.subr.mxu0 0.0
    %253 = vmatpush1.msra.mxu0 0.0
    %254 = vmatprep.subr.mxu0 0.0
    %255 = vmatpush1.msra.mxu0 0.0
    %256 = vmatprep.subr.mxu0 0.0
    %257 = vmatpush1.msra.mxu0 0.0
    %258 = vmatprep.subr.mxu0 0.0
    %259 = vmatpush1.msra.mxu0 0.0
    %260 = vmatprep.subr.mxu0 0.0
    %261 = vmatpush1.msra.mxu0 0.0
    %262 = vmatprep.subr.mxu0 0.0
    %263 = vmatpush1.msra.mxu0 0.0
    %264 = vmatprep.subr.mxu0 0.0
    %265 = vmatpush1.msra.mxu0 0.0
    %266 = vmatprep.subr.mxu0 0.0
    %267 = vmatpush1.msra.mxu0 0.0
    %268 = vmatprep.subr.mxu0 0.0
    %269 = vmatpush1.msra.mxu0 0.0
    %270 = vmatprep.subr.mxu0 0.0
    %271 = vmatpush1.msra.mxu0 0.0
    %272 = vmatprep.subr.mxu0 0.0
    %273 = vmatpush1.msra.mxu0 0.0
    %274 = vmatprep.subr.mxu0 0.0
    %275 = vmatpush1.msra.mxu0 0.0
    %276 = vmatprep.subr.mxu0 0.0
    %277 = vmatpush1.msra.mxu0 0.0
    %278 = vmatprep.subr.mxu0 0.0
    %279 = vmatpush1.msra.mxu0 0.0
    %280 = vmatprep.subr.mxu0 0.0
    %281 = vmatpush1.msra.mxu0 0.0
    %282 = vmatprep.subr.mxu0 0.0
    %283 = vmatpush1.msra.mxu0 0.0
    %284 = vmatprep.subr.mxu0 0.0
    %285 = vmatpush1.msra.mxu0 0.0
    %286 = vmatprep.subr.mxu0 0.0
    %287 = vmatpush1.msra.mxu0 0.0
    %288 = vmatprep.subr.mxu0 0.0
    %289 = vmatpush1.msra.mxu0 0.0
    %290 = vmatprep.subr.mxu0 0.0
    %291 = vmatpush1.msra.mxu0 0.0
    %292 = vmatprep.subr.mxu0 0.0
    %293 = vmatpush1.msra.mxu0 0.0
    %294 = vmatprep.subr.mxu0 0.0
    %295 = vmatpush1.msra.mxu0 0.0
    %296 = vmatprep.subr.mxu0 0.0
    %297 = vmatpush1.msra.mxu0 0.0
    %298 = vmatprep.mubr.f32.mxu0 0.0
    %299 = vmatmul.mubr.f32.gmra.mrb[0].mxu0 %v232
    %v300 = vpop.f32.mrb[0].mxu0
    %v301 = vadd.f32 0.0, %v300
    %v302 = vpop.f32.mrb[0].mxu0
    %303 = vdwg.mxu0
    %v304 = vld [vmem:[%s4] sm:$0xff]
    %v305 = vld [vmem:[%s4 + $0x8] sm:$0xff]
    %v306 = vld [vmem:[%s4 + $0x10] sm:$0xff]
    %vm307 = vcmask 195584
    %v309 = vsel %vm307, %v301, 0
    %311 = vmatprep.subr.mxu0 0.0
    %312 = vmatpush1.msra.mxu0 %v304
    %313 = vmatprep.subr.mxu0 0.0
    %314 = vmatpush1.msra.mxu0 %v305
    %315 = vmatprep.subr.mxu0 0.0
    %316 = vmatpush1.msra.mxu0 %v306
    %317 = vmatprep.subr.mxu0 0.0
    %318 = vmatpush1.msra.mxu0 0.0
    %319 = vmatprep.subr.mxu0 0.0
    %320 = vmatpush1.msra.mxu0 0.0
    %321 = vmatprep.subr.mxu0 0.0
    %322 = vmatpush1.msra.mxu0 0.0
    %323 = vmatprep.subr.mxu0 0.0
    %324 = vmatpush1.msra.mxu0 0.0
    %325 = vmatprep.subr.mxu0 0.0
    %326 = vmatpush1.msra.mxu0 0.0
    %327 = vmatprep.subr.mxu0 0.0
    %328 = vmatpush1.msra.mxu0 0.0
    %329 = vmatprep.subr.mxu0 0.0
    %330 = vmatpush1.msra.mxu0 0.0
    %331 = vmatprep.subr.mxu0 0.0
    %332 = vmatpush1.msra.mxu0 0.0
    %333 = vmatprep.subr.mxu0 0.0
    %334 = vmatpush1.msra.mxu0 0.0
    %335 = vmatprep.subr.mxu0 0.0
    %336 = vmatpush1.msra.mxu0 0.0
    %337 = vmatprep.subr.mxu0 0.0
    %338 = vmatpush1.msra.mxu0 0.0
    %339 = vmatprep.subr.mxu0 0.0
    %340 = vmatpush1.msra.mxu0 0.0
    %341 = vmatprep.subr.mxu0 0.0
    %342 = vmatpush1.msra.mxu0 0.0
    %343 = vmatprep.subr.mxu0 0.0
    %344 = vmatpush1.msra.mxu0 0.0
    %345 = vmatprep.subr.mxu0 0.0
    %346 = vmatpush1.msra.mxu0 0.0
    %347 = vmatprep.subr.mxu0 0.0
    %348 = vmatpush1.msra.mxu0 0.0
    %349 = vmatprep.subr.mxu0 0.0
    %350 = vmatpush1.msra.mxu0 0.0
    %351 = vmatprep.subr.mxu0 0.0
    %352 = vmatpush1.msra.mxu0 0.0
    %353 = vmatprep.subr.mxu0 0.0
    %354 = vmatpush1.msra.mxu0 0.0
    %355 = vmatprep.subr.mxu0 0.0
    %356 = vmatpush1.msra.mxu0 0.0
    %357 = vmatprep.subr.mxu0 0.0
    %358 = vmatpush1.msra.mxu0 0.0
    %359 = vmatprep.subr.mxu0 0.0
    %360 = vmatpush1.msra.mxu0 0.0
    %361 = vmatprep.subr.mxu0 0.0
    %362 = vmatpush1.msra.mxu0 0.0
    %363 = vmatprep.subr.mxu0 0.0
    %364 = vmatpush1.msra.mxu0 0.0
    %365 = vmatprep.subr.mxu0 0.0
    %366 = vmatpush1.msra.mxu0 0.0
    %367 = vmatprep.subr.mxu0 0.0
    %368 = vmatpush1.msra.mxu0 0.0
    %369 = vmatprep.subr.mxu0 0.0
    %370 = vmatpush1.msra.mxu0 0.0
    %371 = vmatprep.subr.mxu0 0.0
    %372 = vmatpush1.msra.mxu0 0.0
    %373 = vmatprep.subr.mxu0 0.0
    %374 = vmatpush1.msra.mxu0 0.0
    %375 = vmatprep.mubr.f32.mxu0 0.0
    %376 = vmatmul.mubr.f32.gmra.mrb[0].mxu0 %v309
    %v377 = vpop.f32.mrb[0].mxu0
    %v378 = vadd.f32 0.0, %v377
    %v379 = vpop.f32.mrb[0].mxu0
    %380 = vdwg.mxu0
    %381 = vst [vmem:[#allocation2] sm:$0x3] %v378
    // Predicated region
    $region22: #{ann_textcnn_forward.1} parent=1 // pred_check
      _
    $region23: #{ann_textcnn_forward.1} parent=1 // pred_check_branch
      %383 = sbr.rel (0) target = $region25
    $region24: #{ann_textcnn_forward.1} parent=1 // pred_region
      %s385 = ssub.s32 32, 32
      %386 = vsyncadd [#allocation3], %s385
      %s388 = sshll.u32 [#allocation2], 4
      %s389 = int_to_ptr.vmem [resolvable:$true] %s388
      %391 = dma.vmem_to_hbm [thread:$0]  %s389, 32, %s5, [#allocation3]
    $region25: #{ann_textcnn_forward.1} parent=1 // pred_fallthru
      _
    // Predicated region
    $region26: #{ann_textcnn_forward.1} parent=1 // pred_check
      _
    $region27: #{ann_textcnn_forward.1} parent=1 // pred_check_branch
      %393 = sbr.rel (0) target = $region29
    $region28: #{ann_textcnn_forward.1} parent=1 // pred_region
      %394 = dma.done [#allocation3], 32
    $region29: #{ann_textcnn_forward.1} parent=1 // pred_fallthru
      _
    %395 = vsyncpa [#allocation3], 1

</llo_original>
